<compile_context>
chip_gen: v6e
topology: v6e:2x2x1
jax: 0.10.0
libtpu: 0.0.40
codegen_flags: <defaults>
</compile_context>

<pallas_src>
import math

import jax
import jax.numpy as jnp
from jax.experimental import pallas as pl
from jax.experimental.pallas import tpu as pltpu


LANE_BLOCK = 128   # lanes reserved per batch sample (lane-dense activation layout)
SLAB_WIDTH = 128   # lane-dense parameter-slab width


# ----------------------------- static geometry helpers -----------------------------

def _rup(x, m):
    return (x + m - 1) // m * m


def _conv_out_len(L, K, s, p, d):
    return (L + 2 * p - d * (K - 1) - 1) // s + 1


def _layer_geoms(options, L0):
    """Static per-layer geometry: (C_in, C_out, K, stride, pad, dil, L_in, L_out)."""
    geoms = []
    L = L0
    for (c_in, c_out, k, s, p, d) in options['conv_dims'][:-1]:
        L_out = _conv_out_len(L, k, s, p, d)
        geoms.append((c_in, c_out, k, s, p, d, L, L_out))
        L = L_out
    return geoms


def _slab_plan(options):
    """Static row layout of the single parameter slab.

    Per layer:
      rows [w_off, w_off + K*C_out): tap k's (C_out, C_in) weights at rows
                                     [w_off + k*C_out, w_off + (k+1)*C_out),
                                     columns [0, C_in) (zero-padded to C_in_p = rup(C_in, 8)).
      rows [v_off, v_off + C_out)  : col 0 = conv bias, col 1 = BN gamma, col 2 = BN beta.
    """
    plan, row = [], 0
    for (c_in, c_out, k, s, p, d) in options['conv_dims'][:-1]:
        c_in_p = _rup(c_in, 8)
        w_off = row
        row = _rup(row + k * c_out, 8)
        v_off = row
        row = _rup(row + c_out, 8)
        plan.append((w_off, v_off, c_in_p))
    return plan, row


# --------------------------- one-time parameter packing -----------------------------

def pack_cpc_params(params, options):
    """Re-layout ALL layer parameters into one lane-dense f32 slab (single DMA)."""
    plan, rows = _slab_plan(options)
    slab = jnp.zeros((rows, SLAB_WIDTH), jnp.float32)
    for (w, b, gamma, beta), (w_off, v_off, _) in zip(params, plan):
        c_out, c_in, K = w.shape
        # (C_out, C_in, K) -> (K*C_out, C_in): tap-major blocks, row = output channel.
        wt = jnp.transpose(w.astype(jnp.float32), (2, 0, 1)).reshape(K * c_out, c_in)
        slab = slab.at[w_off:w_off + K * c_out, :c_in].set(wt)
        vec = jnp.stack([b, gamma, beta], axis=1).astype(jnp.float32)      # (C_out, 3)
        slab = slab.at[v_off:v_off + c_out, :3].set(vec)
    return slab


# --------------------------------- fused kernel -------------------------------------

def _make_encoder_kernel(geoms, plan, N, use_bn, eps=1e-5, neg_slope=0.01):
    W = N * LANE_BLOCK

    def kernel(slab_ref, x_ref, o_ref):
        y = x_ref[...]                                          # (C_in0_p, N*128), f32
        for (C_in, C_out, K, s, p, d, L_in, L_out), (w_off, v_off, C_in_p) in zip(geoms, plan):
            # --- Conv1d: K accumulated MXU matmuls; per-tap shift = one XLU roll. ---
            # Layout invariant: every 128-lane block holds one sample's data at lanes
            # [0, L_in) and zeros elsewhere, so the rolled-in lanes are either in-block
            # zeros (right pad) or the previous block's zeroed tail (left pad).
            z = None
            for k in range(K):
                # Output lane j reads input lane j + k*d - p  ==  np.roll shift p - k*d.
                shift = (p - k * d) % W
                tap = pltpu.roll(y, shift=shift, axis=1) if shift else y
                w_k = slab_ref[pl.ds(w_off + k * C_out, C_out), pl.ds(0, C_in_p)]
                zk = jnp.dot(w_k, tap, preferred_element_type=jnp.float32)
                z = zk if z is None else z + zk                 # (C_out, N*128)

            # Zero lanes >= L_out in every block: removes the (don't-care) cross-block
            # bleed from positive tap shifts and re-establishes the zero-tail invariant.
            lane = jax.lax.broadcasted_iota(jnp.int32, (1, W), 1)
            valid = (lane & (LANE_BLOCK - 1)) < L_out           # (1, W), bcast over C
            z = jnp.where(valid, z, 0.0)

            if use_bn:
                # Training-mode BatchNorm1d over (N, L): two-pass stats (numerically
                # safer than E[z^2]-mean^2).  Conv bias skipped on purpose — it cancels
                # exactly under the mean subtraction.
                inv_cnt = 1.0 / float(N * L_out)
                mean = jnp.sum(z, axis=-1, keepdims=True) * inv_cnt         # (C_out, 1)
                cen = jnp.where(valid, z - mean, 0.0)
                var = jnp.sum(cen * cen, axis=-1, keepdims=True) * inv_cnt
                gamma = slab_ref[pl.ds(v_off, C_out), pl.ds(1, 1)]
                beta = slab_ref[pl.ds(v_off, C_out), pl.ds(2, 1)]
                act = cen * (jax.lax.rsqrt(var + eps) * gamma) + beta
            else:
                bias = slab_ref[pl.ds(v_off, C_out), pl.ds(0, 1)]
                act = z + bias

            act = jnp.where(act >= 0, act, neg_slope * act)     # LeakyReLU(0.01)
            y = jnp.where(valid, act, 0.0)                      # zero tails for next layer

        o_ref[...] = y                                          # single lane-dense store
    return kernel


# ------------------------------------ wrapper ---------------------------------------

def cpc_encoder_forward(x, slab, options):
    """Fused Pallas forward. x: (N, C_in, L) NCL (PyTorch Conv1d convention)."""
    use_bn = bool(options['isBatchNorm'])
    # TODO(synk): train-mode nn.Dropout (RNG mask) not implemented; eval dropout is identity.
    assert not options['isDropout'], "Dropout disabled for this synthetic kernel."

    N, C0, L0 = x.shape
    geoms = _layer_geoms(options, L0)
    plan, _ = _slab_plan(options)
    for (_, _, K, s, p, d, L_in, L_out) in geoms:
        # TODO(synk): stride > 1 needs a lane-subsampling epilogue; this config is stride=1.
        assert s == 1, "fused kernel currently supports stride=1 only"
        assert L_in + p <= LANE_BLOCK and 1 <= L_out <= LANE_BLOCK, \
            "per-sample length (+pad) must fit one 128-lane block"

    C_last, L_last = geoms[-1][1], geoms[-1][7]
    C0_p = _rup(C0, 8)
    W = N * LANE_BLOCK

    # (N, C, L) -> lane-dense (C0_p, N*128): one zero-tailed 128-lane block per sample.
    xbuf = jnp.zeros((C0_p, N, LANE_BLOCK), jnp.float32)
    xbuf = xbuf.at[:C0, :, :L0].set(jnp.transpose(x.astype(jnp.float32), (1, 0, 2)))
    x2d = xbuf.reshape(C0_p, W)

    flops = sum(2 * Co * _rup(Ci, 8) * K * W
                for (Ci, Co, K, s_, p_, d_, Li, Lo) in geoms)
    transcendentals = sum(Co for (_, Co, *_rest) in geoms) if use_bn else 0
    bytes_accessed = 4 * (int(x2d.size) + int(slab.size) + C_last * W)

    kernel = _make_encoder_kernel(geoms, plan, N, use_bn)
    vmem = pl.BlockSpec(memory_space=pltpu.MemorySpace.VMEM)

    # TODO(synk): production CPC sizes need an L-tiled grid (two-phase BN reduction,
    # 'parallel' batch/L axes for v7x's two TensorCores, tiles sized for its 64 MiB VMEM)
    # instead of this gridless whole-network form, which targets toy shapes only.
    out2d = pl.pallas_call(
        kernel,
        out_shape=jax.ShapeDtypeStruct((C_last, W), jnp.float32),
        in_specs=[vmem, vmem],
        out_specs=vmem,
        cost_estimate=pl.CostEstimate(flops=flops, transcendentals=transcendentals,
                                      bytes_accessed=bytes_accessed),
    )(slab, x2d)

    # (C, N*128) -> (N, C, L): plain-JAX layout plumbing outside the kernel.
    return jnp.transpose(out2d.reshape(C_last, N, LANE_BLOCK)[:, :, :L_last], (1, 0, 2))


# -------------------------- init + pure-JAX reference -------------------------------

def init_cpc_encoder_params(key, options):
    """Deterministic parameter init mirroring nn.Conv1d / nn.BatchNorm1d defaults."""
    params = []
    for layer_dims in options['conv_dims'][:-1]:
        c_in, c_out, k, s, p, d = layer_dims
        key, kw, kb = jax.random.split(key, 3)
        bound = 1.0 / math.sqrt(c_in * k)
        w = jax.random.uniform(kw, (c_out, c_in, k), jnp.float32, -bound, bound)
        b = jax.random.uniform(kb, (c_out,), jnp.float32, -bound, bound)
        gamma = jnp.ones((c_out,), jnp.float32)
        beta = jnp.zeros((c_out,), jnp.float32)
        params.append((w, b, gamma, beta))
    return params


def cpc_encoder_reference(x, params, options):
    """Pure-JAX reference (lax conv) matching PyTorch forward semantics."""
    use_bn = bool(options['isBatchNorm'])
    for (w, b, gamma, beta), layer_dims in zip(params, options['conv_dims'][:-1]):
        _, _, k, s, p, d = layer_dims
        y = jax.lax.conv_general_dilated(
            x, w, window_strides=(s,), padding=[(p, p)], rhs_dilation=(d,),
            dimension_numbers=('NCH', 'OIH', 'NCH'))
        y = y + b[None, :, None]
        if use_bn:
            mean = jnp.mean(y, axis=(0, 2), keepdims=True)
            var = jnp.mean((y - mean) ** 2, axis=(0, 2), keepdims=True)
            y = (y - mean) / jnp.sqrt(var + 1e-5)
            y = y * gamma[None, :, None] + beta[None, :, None]
        x = jnp.where(y >= 0, y, 0.01 * y)
    return x


if __name__ == "__main__":
    options = {
        # (in_ch, out_ch, kernel, stride, padding, dilation); last entry unused (dims[:-1])
        'conv_dims': [[4, 16, 3, 1, 1, 1], [16, 32, 3, 1, 1, 1], [32, 8]],
        'img_size': 16,
        'isBatchNorm': True,
        'isDropout': False,
        'dropout_rate': 0.2,
    }

    key = jax.random.PRNGKey(0)
    kp, kx = jax.random.split(key)
    params = init_cpc_encoder_params(kp, options)
    slab = pack_cpc_params(params, options)     # one-time packing into a single DMA slab

    # Input: (batch, channels, length) = (2, 4, 16), matching Conv1d NCL.
    x = jax.random.normal(kx, (2, 4, 16), jnp.float32)

    out = cpc_encoder_forward(x, slab, options)
    out = jax.block_until_ready(out)

    ref = cpc_encoder_reference(x, params, options)
    assert out.shape == (2, 32, 16), out.shape
    assert out.dtype == jnp.float32
    assert jnp.allclose(out, ref, atol=2e-3, rtol=2e-3), "mismatch vs reference"

    print("KERNEL_OK")
</pallas_src>

<mosaic_0001>
module attributes {stable_mosaic.version = 11 : i64} {
  func.func @kernel(%arg0: memref<192x128xf32, #tpu.memory_space<vmem>>, %arg1: memref<8x256xf32, #tpu.memory_space<vmem>>, %arg2: memref<32x256xf32, #tpu.memory_space<vmem>>) attributes {dimension_semantics = [], scalar_prefetch = 0 : i64, scratch_operands = 0 : i64, tpu.core_type = #tpu.core_type<tc>} {
    %c0 = arith.constant 0 : index
    %c0_0 = arith.constant 0 : index
    %0 = vector.load %arg1[%c0, %c0_0] : memref<8x256xf32, #tpu.memory_space<vmem>>, vector<8x256xf32>
    %c1_i32 = arith.constant 1 : i32
    %1 = tpu.dynamic_rotate %0 by %c1_i32 dim 1 : vector<8x256xf32>, i32 -> vector<8x256xf32>
    %c0_1 = arith.constant 0 : index
    %c0_2 = arith.constant 0 : index
    %2 = vector.load %arg0[%c0_1, %c0_2] : memref<192x128xf32, #tpu.memory_space<vmem>>, vector<16x8xf32>
    %cst = arith.constant dense<0.000000e+00> : vector<16x256xf32>
    %3 = tpu.matmul %2, %1, %cst {dimension_numbers = #tpu.dot_dimension_numbers<[1], [0], [0], [1], [0, 0, 1, 1], [], []>} : vector<16x8xf32>, vector<8x256xf32>, vector<16x256xf32> -> vector<16x256xf32>
    %c16 = arith.constant 16 : index
    %c0_3 = arith.constant 0 : index
    %4 = vector.load %arg0[%c16, %c0_3] : memref<192x128xf32, #tpu.memory_space<vmem>>, vector<16x8xf32>
    %cst_4 = arith.constant dense<0.000000e+00> : vector<16x256xf32>
    %5 = tpu.matmul %4, %0, %cst_4 {dimension_numbers = #tpu.dot_dimension_numbers<[1], [0], [0], [1], [0, 0, 1, 1], [], []>} : vector<16x8xf32>, vector<8x256xf32>, vector<16x256xf32> -> vector<16x256xf32>
    %6 = arith.addf %3, %5 : vector<16x256xf32>
    %c255_i32 = arith.constant 255 : i32
    %7 = tpu.dynamic_rotate %0 by %c255_i32 dim 1 : vector<8x256xf32>, i32 -> vector<8x256xf32>
    %c32 = arith.constant 32 : index
    %c0_5 = arith.constant 0 : index
    %8 = vector.load %arg0[%c32, %c0_5] : memref<192x128xf32, #tpu.memory_space<vmem>>, vector<16x8xf32>
    %cst_6 = arith.constant dense<0.000000e+00> : vector<16x256xf32>
    %9 = tpu.matmul %8, %7, %cst_6 {dimension_numbers = #tpu.dot_dimension_numbers<[1], [0], [0], [1], [0, 0, 1, 1], [], []>} : vector<16x8xf32>, vector<8x256xf32>, vector<16x256xf32> -> vector<16x256xf32>
    %10 = arith.addf %6, %9 : vector<16x256xf32>
    %11 = tpu.iota {dimensions = array<i32: 1>} : vector<1x256xi32>
    %c127_i32 = arith.constant 127 : i32
    %12 = vector.broadcast %c127_i32 : i32 to vector<1x256xi32>
    %13 = arith.andi %11, %12 : vector<1x256xi32>
    %c16_i32 = arith.constant 16 : i32
    %14 = vector.broadcast %c16_i32 : i32 to vector<1x256xi32>
    %15 = arith.cmpi slt, %13, %14 : vector<1x256xi32>
    %cst_7 = arith.constant 0.000000e+00 : f32
    %16 = vector.shape_cast %15 : vector<1x256xi1> to vector<1x256xi1>
    %17 = vector.broadcast %16 : vector<1x256xi1> to vector<16x256xi1>
    %18 = vector.broadcast %cst_7 : f32 to vector<16x256xf32>
    %19 = arith.select %17, %10, %18 : vector<16x256xi1>, vector<16x256xf32>
    %cst_8 = arith.constant dense<0.000000e+00> : vector<16xf32>
    %20 = vector.multi_reduction <add>, %19, %cst_8 [1] : vector<16x256xf32> to vector<16xf32>
    %21 = vector.shape_cast %20 : vector<16xf32> to vector<16x1xf32>
    %cst_9 = arith.constant 3.125000e-02 : f32
    %22 = vector.broadcast %cst_9 : f32 to vector<16x1xf32>
    %23 = arith.mulf %21, %22 : vector<16x1xf32>
    %24 = vector.broadcast %23 : vector<16x1xf32> to vector<16x256xf32>
    %25 = arith.subf %19, %24 : vector<16x256xf32>
    %cst_10 = arith.constant 0.000000e+00 : f32
    %26 = vector.shape_cast %15 : vector<1x256xi1> to vector<1x256xi1>
    %27 = vector.broadcast %26 : vector<1x256xi1> to vector<16x256xi1>
    %28 = vector.broadcast %cst_10 : f32 to vector<16x256xf32>
    %29 = arith.select %27, %25, %28 : vector<16x256xi1>, vector<16x256xf32>
    %30 = arith.mulf %29, %29 : vector<16x256xf32>
    %cst_11 = arith.constant dense<0.000000e+00> : vector<16xf32>
    %31 = vector.multi_reduction <add>, %30, %cst_11 [1] : vector<16x256xf32> to vector<16xf32>
    %32 = vector.shape_cast %31 : vector<16xf32> to vector<16x1xf32>
    %cst_12 = arith.constant 3.125000e-02 : f32
    %33 = vector.broadcast %cst_12 : f32 to vector<16x1xf32>
    %34 = arith.mulf %32, %33 : vector<16x1xf32>
    %c48 = arith.constant 48 : index
    %c1 = arith.constant 1 : index
    %35 = vector.load %arg0[%c48, %c1] : memref<192x128xf32, #tpu.memory_space<vmem>>, vector<16x1xf32>
    %c48_13 = arith.constant 48 : index
    %c2 = arith.constant 2 : index
    %36 = vector.load %arg0[%c48_13, %c2] : memref<192x128xf32, #tpu.memory_space<vmem>>, vector<16x1xf32>
    %cst_14 = arith.constant 9.99999974E-6 : f32
    %37 = vector.broadcast %cst_14 : f32 to vector<16x1xf32>
    %38 = arith.addf %34, %37 : vector<16x1xf32>
    %39 = math.rsqrt %38 : vector<16x1xf32>
    %40 = arith.mulf %39, %35 : vector<16x1xf32>
    %41 = vector.broadcast %40 : vector<16x1xf32> to vector<16x256xf32>
    %42 = arith.mulf %29, %41 : vector<16x256xf32>
    %43 = vector.broadcast %36 : vector<16x1xf32> to vector<16x256xf32>
    %44 = arith.addf %42, %43 : vector<16x256xf32>
    %cst_15 = arith.constant 0.000000e+00 : f32
    %45 = vector.broadcast %cst_15 : f32 to vector<16x256xf32>
    %46 = arith.cmpf oge, %44, %45 : vector<16x256xf32>
    %cst_16 = arith.constant 0.00999999977 : f32
    %47 = vector.broadcast %cst_16 : f32 to vector<16x256xf32>
    %48 = arith.mulf %47, %44 : vector<16x256xf32>
    %49 = arith.select %46, %44, %48 : vector<16x256xi1>, vector<16x256xf32>
    %cst_17 = arith.constant 0.000000e+00 : f32
    %50 = vector.shape_cast %15 : vector<1x256xi1> to vector<1x256xi1>
    %51 = vector.broadcast %50 : vector<1x256xi1> to vector<16x256xi1>
    %52 = vector.broadcast %cst_17 : f32 to vector<16x256xf32>
    %53 = arith.select %51, %49, %52 : vector<16x256xi1>, vector<16x256xf32>
    %c1_i32_18 = arith.constant 1 : i32
    %54 = tpu.dynamic_rotate %53 by %c1_i32_18 dim 1 : vector<16x256xf32>, i32 -> vector<16x256xf32>
    %c64 = arith.constant 64 : index
    %c0_19 = arith.constant 0 : index
    %55 = vector.load %arg0[%c64, %c0_19] : memref<192x128xf32, #tpu.memory_space<vmem>>, vector<32x16xf32>
    %cst_20 = arith.constant dense<0.000000e+00> : vector<32x256xf32>
    %56 = tpu.matmul %55, %54, %cst_20 {dimension_numbers = #tpu.dot_dimension_numbers<[1], [0], [0], [1], [0, 0, 1, 1], [], []>} : vector<32x16xf32>, vector<16x256xf32>, vector<32x256xf32> -> vector<32x256xf32>
    %c96 = arith.constant 96 : index
    %c0_21 = arith.constant 0 : index
    %57 = vector.load %arg0[%c96, %c0_21] : memref<192x128xf32, #tpu.memory_space<vmem>>, vector<32x16xf32>
    %cst_22 = arith.constant dense<0.000000e+00> : vector<32x256xf32>
    %58 = tpu.matmul %57, %53, %cst_22 {dimension_numbers = #tpu.dot_dimension_numbers<[1], [0], [0], [1], [0, 0, 1, 1], [], []>} : vector<32x16xf32>, vector<16x256xf32>, vector<32x256xf32> -> vector<32x256xf32>
    %59 = arith.addf %56, %58 : vector<32x256xf32>
    %c255_i32_23 = arith.constant 255 : i32
    %60 = tpu.dynamic_rotate %53 by %c255_i32_23 dim 1 : vector<16x256xf32>, i32 -> vector<16x256xf32>
    %c128 = arith.constant 128 : index
    %c0_24 = arith.constant 0 : index
    %61 = vector.load %arg0[%c128, %c0_24] : memref<192x128xf32, #tpu.memory_space<vmem>>, vector<32x16xf32>
    %cst_25 = arith.constant dense<0.000000e+00> : vector<32x256xf32>
    %62 = tpu.matmul %61, %60, %cst_25 {dimension_numbers = #tpu.dot_dimension_numbers<[1], [0], [0], [1], [0, 0, 1, 1], [], []>} : vector<32x16xf32>, vector<16x256xf32>, vector<32x256xf32> -> vector<32x256xf32>
    %63 = arith.addf %59, %62 : vector<32x256xf32>
    %64 = tpu.iota {dimensions = array<i32: 1>} : vector<1x256xi32>
    %c127_i32_26 = arith.constant 127 : i32
    %65 = vector.broadcast %c127_i32_26 : i32 to vector<1x256xi32>
    %66 = arith.andi %64, %65 : vector<1x256xi32>
    %c16_i32_27 = arith.constant 16 : i32
    %67 = vector.broadcast %c16_i32_27 : i32 to vector<1x256xi32>
    %68 = arith.cmpi slt, %66, %67 : vector<1x256xi32>
    %cst_28 = arith.constant 0.000000e+00 : f32
    %69 = vector.shape_cast %68 : vector<1x256xi1> to vector<1x256xi1>
    %70 = vector.broadcast %69 : vector<1x256xi1> to vector<32x256xi1>
    %71 = vector.broadcast %cst_28 : f32 to vector<32x256xf32>
    %72 = arith.select %70, %63, %71 : vector<32x256xi1>, vector<32x256xf32>
    %cst_29 = arith.constant dense<0.000000e+00> : vector<32xf32>
    %73 = vector.multi_reduction <add>, %72, %cst_29 [1] : vector<32x256xf32> to vector<32xf32>
    %74 = vector.shape_cast %73 : vector<32xf32> to vector<32x1xf32>
    %cst_30 = arith.constant 3.125000e-02 : f32
    %75 = vector.broadcast %cst_30 : f32 to vector<32x1xf32>
    %76 = arith.mulf %74, %75 : vector<32x1xf32>
    %77 = vector.broadcast %76 : vector<32x1xf32> to vector<32x256xf32>
    %78 = arith.subf %72, %77 : vector<32x256xf32>
    %cst_31 = arith.constant 0.000000e+00 : f32
    %79 = vector.shape_cast %68 : vector<1x256xi1> to vector<1x256xi1>
    %80 = vector.broadcast %79 : vector<1x256xi1> to vector<32x256xi1>
    %81 = vector.broadcast %cst_31 : f32 to vector<32x256xf32>
    %82 = arith.select %80, %78, %81 : vector<32x256xi1>, vector<32x256xf32>
    %83 = arith.mulf %82, %82 : vector<32x256xf32>
    %cst_32 = arith.constant dense<0.000000e+00> : vector<32xf32>
    %84 = vector.multi_reduction <add>, %83, %cst_32 [1] : vector<32x256xf32> to vector<32xf32>
    %85 = vector.shape_cast %84 : vector<32xf32> to vector<32x1xf32>
    %cst_33 = arith.constant 3.125000e-02 : f32
    %86 = vector.broadcast %cst_33 : f32 to vector<32x1xf32>
    %87 = arith.mulf %85, %86 : vector<32x1xf32>
    %c160 = arith.constant 160 : index
    %c1_34 = arith.constant 1 : index
    %88 = vector.load %arg0[%c160, %c1_34] : memref<192x128xf32, #tpu.memory_space<vmem>>, vector<32x1xf32>
    %c160_35 = arith.constant 160 : index
    %c2_36 = arith.constant 2 : index
    %89 = vector.load %arg0[%c160_35, %c2_36] : memref<192x128xf32, #tpu.memory_space<vmem>>, vector<32x1xf32>
    %cst_37 = arith.constant 9.99999974E-6 : f32
    %90 = vector.broadcast %cst_37 : f32 to vector<32x1xf32>
    %91 = arith.addf %87, %90 : vector<32x1xf32>
    %92 = math.rsqrt %91 : vector<32x1xf32>
    %93 = arith.mulf %92, %88 : vector<32x1xf32>
    %94 = vector.broadcast %93 : vector<32x1xf32> to vector<32x256xf32>
    %95 = arith.mulf %82, %94 : vector<32x256xf32>
    %96 = vector.broadcast %89 : vector<32x1xf32> to vector<32x256xf32>
    %97 = arith.addf %95, %96 : vector<32x256xf32>
    %cst_38 = arith.constant 0.000000e+00 : f32
    %98 = vector.broadcast %cst_38 : f32 to vector<32x256xf32>
    %99 = arith.cmpf oge, %97, %98 : vector<32x256xf32>
    %cst_39 = arith.constant 0.00999999977 : f32
    %100 = vector.broadcast %cst_39 : f32 to vector<32x256xf32>
    %101 = arith.mulf %100, %97 : vector<32x256xf32>
    %102 = arith.select %99, %97, %101 : vector<32x256xi1>, vector<32x256xf32>
    %cst_40 = arith.constant 0.000000e+00 : f32
    %103 = vector.shape_cast %68 : vector<1x256xi1> to vector<1x256xi1>
    %104 = vector.broadcast %103 : vector<1x256xi1> to vector<32x256xi1>
    %105 = vector.broadcast %cst_40 : f32 to vector<32x256xf32>
    %106 = arith.select %104, %102, %105 : vector<32x256xi1>, vector<32x256xf32>
    %c0_41 = arith.constant 0 : index
    %c0_42 = arith.constant 0 : index
    %107 = vector.load %arg2[%c0_41, %c0_42] : memref<32x256xf32, #tpu.memory_space<vmem>>, vector<32x256xf32>
    tpu.vector_store %arg2[%c0_41, %c0_42], %106 {strides = array<i32>} : memref<32x256xf32, #tpu.memory_space<vmem>>, vector<32x256xf32>,
    return
  }
}

</mosaic_0001>

<llo_original>
// kernel: tpu_custom_call.1
$region0: #{tpu_custom_call.1}
  #allocation0 [shape = 'u32[]', space=smem, size = 0x4, offset = 0x4, fixed_abs, tag = 'smem constant byte address 0x4 - core index']
  #allocation1 [shape = 'u32[144,128]{1,0:T(1,128)}', space=vmem, size = 0x12000, scoped, tag = 'internal scratch']
  %s0 = inlined_call_operand.hbm [shape: f32[192,128], index: 0, kind: input, shape index: {}]
  %s1 = inlined_call_operand.hbm [shape: f32[8,256], index: 1, kind: input, shape index: {}]
  %s2 = inlined_call_operand.hbm [shape: f32[32,256], index: 2, kind: output, shape index: {}]
  %s3 = sld [smem:[#allocation0]]
  $region26: #{tpu_custom_call.1} parent=0
    _
  %s5 = ssub.s32 1, %s3
  %s6 = scalar_select 0, %s5, %s3
  $region1: #{tpu_custom_call.1} parent=0
    #allocation2 [shape = 'u8[98304]{0}', space=vmem, size = 0x18000, scoped, tag = 'input window, operand 0, single buffered']
    #allocation3 [shape = 's32[1]{0}', space=sflag, size = 0x4, scoped, tag = 'scoped memory for tpu_custom_call.1']
    #allocation4 [shape = 's32[1]{0}', space=sflag, size = 0x4, scoped, tag = 'scoped memory for tpu_custom_call.1']
    #allocation5 [shape = 'u8[8192]{0}', space=vmem, size = 0x2000, scoped, tag = 'input window, operand 1, single buffered']
    #allocation6 [shape = 's32[1]{0}', space=sflag, size = 0x4, scoped, tag = 'scoped memory for tpu_custom_call.1']
    #allocation7 [shape = 'u8[32768]{0}', space=vmem, size = 0x8000, scoped, tag = 'output window, operand 0, single buffered']
    %7 = vsyncpa [#allocation3], 0
    %8 = vsyncpa [#allocation6], 0
    %9 = vsyncpa [#allocation4], 0
    // Predicated region
    $region2: #{tpu_custom_call.1} parent=1 // pred_check
      _
    $region3: #{tpu_custom_call.1} parent=1 // pred_check_branch
      %11 = sbr.rel (0) target = $region5
    $region4: #{tpu_custom_call.1} parent=1 // pred_region
      %s13 = ssub.s32 3072, 3072
      %14 = vsyncadd [#allocation3], %s13
      %s15 = sshll.u32 [#allocation2], 4
      %s16 = int_to_ptr.vmem [resolvable:$true] %s15
      %21 = dma.hbm_to_vmem [thread:$0]  %s0, 3072, %s16, [#allocation3], 128, 128, 8
    $region5: #{tpu_custom_call.1} parent=1 // pred_fallthru
      _
    // Predicated region
    $region6: #{tpu_custom_call.1} parent=1 // pred_check
      _
    $region7: #{tpu_custom_call.1} parent=1 // pred_check_branch
      %23 = sbr.rel (0) target = $region9
    $region8: #{tpu_custom_call.1} parent=1 // pred_region
      %s25 = ssub.s32 256, 256
      %26 = vsyncadd [#allocation6], %s25
      %s28 = sshll.u32 [#allocation5], 4
      %s29 = int_to_ptr.vmem [resolvable:$true] %s28
      %31 = dma.hbm_to_vmem [thread:$0]  %s1, 256, %s29, [#allocation6]
    $region9: #{tpu_custom_call.1} parent=1 // pred_fallthru
      _
    // Predicated region
    $region10: #{tpu_custom_call.1} parent=1 // pred_check
      _
    $region11: #{tpu_custom_call.1} parent=1 // pred_check_branch
      %33 = sbr.rel (0) target = $region13
    $region12: #{tpu_custom_call.1} parent=1 // pred_region
      %34 = dma.done [#allocation3], 3072
    $region13: #{tpu_custom_call.1} parent=1 // pred_fallthru
      _
    // Predicated region
    $region14: #{tpu_custom_call.1} parent=1 // pred_check
      _
    $region15: #{tpu_custom_call.1} parent=1 // pred_check_branch
      %36 = sbr.rel (0) target = $region17
    $region16: #{tpu_custom_call.1} parent=1 // pred_region
      %37 = dma.done [#allocation6], 256
    $region17: #{tpu_custom_call.1} parent=1 // pred_fallthru
      _
    %v38 = vld [vmem:[#allocation5] sm:$0xff]
    %v39 = vld [vmem:[#allocation5 + $0x8] sm:$0xff]
    %40 = vrot.lane.b32.xlu0 %v38, 1
    %v41 = vpop.permute.xlu0 %40
    %42 = vrot.lane.b32.xlu0 %v39, 1
    %v43 = vpop.permute.xlu0 %42
    %v44 = vlaneseq
    %v45 = vand.u32 %v44, 127
    %vm46 = vcmp.lt.s32.totalorder %v45, 1
    %v47 = vsel %vm46, %v41, %v43
    %v48 = vsel %vm46, %v43, %v41
    %v49 = vld [vmem:[#allocation2] sm:$0xff]
    %v50 = vld [vmem:[#allocation2 + $0x8] sm:$0xff]
    %v51 = vld [vmem:[#allocation2 + $0x10] sm:$0xff]
    %v52 = vld [vmem:[#allocation2 + $0x18] sm:$0xff]
    %vm53 = vcmask 64512
    %v55 = vsel %vm53, %v51, 0
    %v58 = vsel %vm53, %v52, 0
    %60 = vmatprep.subr.mxu0 0.0
    %61 = vmatpush1.msra.mxu0 0.0
    %62 = vmatprep.subr.mxu0 0.0
    %63 = vmatpush1.msra.mxu0 0.0
    %64 = vmatprep.subr.mxu0 0.0
    %65 = vmatpush1.msra.mxu0 0.0
    %66 = vmatprep.subr.mxu0 0.0
    %67 = vmatpush1.msra.mxu0 0.0
    %68 = vmatprep.subr.mxu0 0.0
    %69 = vmatpush1.msra.mxu0 0.0
    %70 = vmatprep.subr.mxu0 0.0
    %71 = vmatpush1.msra.mxu0 0.0
    %72 = vmatprep.subr.mxu0 0.0
    %73 = vmatpush1.msra.mxu0 0.0
    %74 = vmatprep.subr.mxu0 0.0
    %75 = vmatpush1.msra.mxu0 0.0
    %76 = vmatprep.subr.mxu0 0.0
    %77 = vmatpush1.msra.mxu0 0.0
    %78 = vmatprep.subr.mxu0 0.0
    %79 = vmatpush1.msra.mxu0 0.0
    %80 = vmatprep.subr.mxu0 0.0
    %81 = vmatpush1.msra.mxu0 0.0
    %82 = vmatprep.subr.mxu0 0.0
    %83 = vmatpush1.msra.mxu0 0.0
    %84 = vmatprep.subr.mxu0 0.0
    %85 = vmatpush1.msra.mxu0 0.0
    %86 = vmatprep.subr.mxu0 0.0
    %87 = vmatpush1.msra.mxu0 0.0
    %88 = vmatprep.subr.mxu0 0.0
    %89 = vmatpush1.msra.mxu0 0.0
    %90 = vmatprep.subr.mxu0 %v39
    %91 = vmatpush1.msra.mxu0 %v38
    %92 = vmatprep.subr.mxu0 0.0
    %93 = vmatpush2.msra.mxu0 0.0
    %94 = vmatprep.subr.mxu0 0.0
    %95 = vmatpush2.msra.mxu0 0.0
    %96 = vmatprep.subr.mxu0 0.0
    %97 = vmatpush2.msra.mxu0 0.0
    %98 = vmatprep.subr.mxu0 0.0
    %99 = vmatpush2.msra.mxu0 0.0
    %100 = vmatprep.subr.mxu0 0.0
    %101 = vmatpush2.msra.mxu0 0.0
    %102 = vmatprep.subr.mxu0 0.0
    %103 = vmatpush2.msra.mxu0 0.0
    %104 = vmatprep.subr.mxu0 0.0
    %105 = vmatpush2.msra.mxu0 0.0
    %106 = vmatprep.subr.mxu0 0.0
    %107 = vmatpush2.msra.mxu0 0.0
    %108 = vmatprep.subr.mxu0 0.0
    %109 = vmatpush2.msra.mxu0 0.0
    %110 = vmatprep.subr.mxu0 0.0
    %111 = vmatpush2.msra.mxu0 0.0
    %112 = vmatprep.subr.mxu0 0.0
    %113 = vmatpush2.msra.mxu0 0.0
    %114 = vmatprep.subr.mxu0 0.0
    %115 = vmatpush2.msra.mxu0 0.0
    %116 = vmatprep.subr.mxu0 0.0
    %117 = vmatpush2.msra.mxu0 0.0
    %118 = vmatprep.subr.mxu0 0.0
    %119 = vmatpush2.msra.mxu0 0.0
    %120 = vmatprep.subr.mxu0 0.0
    %121 = vmatpush2.msra.mxu0 0.0
    %122 = vmatprep.subr.mxu0 0.0
    %123 = vmatpush2.msra.mxu0 0.0
    %124 = vmatprep.mubr.f32.mxu0 0.0
    %125 = vmatmul.mubr.f32.gmra.mxu0 %v55
    %v126 = vpop.f32.mrf.mxu0
    %v127 = vadd.f32 0.0, %v126
    %v128 = vpop.f32.mrf.mxu0
    %v129 = vadd.f32 0.0, %v128
    %130 = vmatprep.mubr.f32.mxu0 0.0
    %131 = vmatmul.mubr.f32.gmra.mxu0 %v58
    %v132 = vpop.f32.mrf.mxu0
    %v133 = vadd.f32 0.0, %v132
    %v134 = vpop.f32.mrf.mxu0
    %v135 = vadd.f32 0.0, %v134
    %136 = vdwg.mxu0
    %v138 = vsel %vm53, %v49, 0
    %v141 = vsel %vm53, %v50, 0
    %143 = vmatprep.subr.mxu0 0.0
    %144 = vmatpush1.msra.mxu0 0.0
    %145 = vmatprep.subr.mxu0 0.0
    %146 = vmatpush1.msra.mxu0 0.0
    %147 = vmatprep.subr.mxu0 0.0
    %148 = vmatpush1.msra.mxu0 0.0
    %149 = vmatprep.subr.mxu0 0.0
    %150 = vmatpush1.msra.mxu0 0.0
    %151 = vmatprep.subr.mxu0 0.0
    %152 = vmatpush1.msra.mxu0 0.0
    %153 = vmatprep.subr.mxu0 0.0
    %154 = vmatpush1.msra.mxu0 0.0
    %155 = vmatprep.subr.mxu0 0.0
    %156 = vmatpush1.msra.mxu0 0.0
    %157 = vmatprep.subr.mxu0 0.0
    %158 = vmatpush1.msra.mxu0 0.0
    %159 = vmatprep.subr.mxu0 0.0
    %160 = vmatpush1.msra.mxu0 0.0
    %161 = vmatprep.subr.mxu0 0.0
    %162 = vmatpush1.msra.mxu0 0.0
    %163 = vmatprep.subr.mxu0 0.0
    %164 = vmatpush1.msra.mxu0 0.0
    %165 = vmatprep.subr.mxu0 0.0
    %166 = vmatpush1.msra.mxu0 0.0
    %167 = vmatprep.subr.mxu0 0.0
    %168 = vmatpush1.msra.mxu0 0.0
    %169 = vmatprep.subr.mxu0 0.0
    %170 = vmatpush1.msra.mxu0 0.0
    %171 = vmatprep.subr.mxu0 0.0
    %172 = vmatpush1.msra.mxu0 0.0
    %173 = vmatprep.subr.mxu0 %v47
    %174 = vmatpush1.msra.mxu0 %v48
    %175 = vmatprep.subr.mxu0 0.0
    %176 = vmatpush2.msra.mxu0 0.0
    %177 = vmatprep.subr.mxu0 0.0
    %178 = vmatpush2.msra.mxu0 0.0
    %179 = vmatprep.subr.mxu0 0.0
    %180 = vmatpush2.msra.mxu0 0.0
    %181 = vmatprep.subr.mxu0 0.0
    %182 = vmatpush2.msra.mxu0 0.0
    %183 = vmatprep.subr.mxu0 0.0
    %184 = vmatpush2.msra.mxu0 0.0
    %185 = vmatprep.subr.mxu0 0.0
    %186 = vmatpush2.msra.mxu0 0.0
    %187 = vmatprep.subr.mxu0 0.0
    %188 = vmatpush2.msra.mxu0 0.0
    %189 = vmatprep.subr.mxu0 0.0
    %190 = vmatpush2.msra.mxu0 0.0
    %191 = vmatprep.subr.mxu0 0.0
    %192 = vmatpush2.msra.mxu0 0.0
    %193 = vmatprep.subr.mxu0 0.0
    %194 = vmatpush2.msra.mxu0 0.0
    %195 = vmatprep.subr.mxu0 0.0
    %196 = vmatpush2.msra.mxu0 0.0
    %197 = vmatprep.subr.mxu0 0.0
    %198 = vmatpush2.msra.mxu0 0.0
    %199 = vmatprep.subr.mxu0 0.0
    %200 = vmatpush2.msra.mxu0 0.0
    %201 = vmatprep.subr.mxu0 0.0
    %202 = vmatpush2.msra.mxu0 0.0
    %203 = vmatprep.subr.mxu0 0.0
    %204 = vmatpush2.msra.mxu0 0.0
    %205 = vmatprep.subr.mxu0 0.0
    %206 = vmatpush2.msra.mxu0 0.0
    %207 = vmatprep.mubr.f32.mxu0 0.0
    %208 = vmatmul.mubr.f32.gmra.mxu0 %v138
    %v209 = vpop.f32.mrf.mxu0
    %v210 = vadd.f32 %v127, %v209
    %v211 = vpop.f32.mrf.mxu0
    %v212 = vadd.f32 %v129, %v211
    %213 = vmatprep.mubr.f32.mxu0 0.0
    %214 = vmatmul.mubr.f32.gmra.mxu0 %v141
    %v215 = vpop.f32.mrf.mxu0
    %v216 = vadd.f32 %v133, %v215
    %v217 = vpop.f32.mrf.mxu0
    %v218 = vadd.f32 %v135, %v217
    %219 = vdwg.mxu0
    %220 = vrot.lane.b32.xlu0 %v38, 127
    %v221 = vpop.permute.xlu0 %220
    %222 = vrot.lane.b32.xlu0 %v39, 127
    %v223 = vpop.permute.xlu0 %222
    %vm224 = vcmp.lt.s32.totalorder %v45, 127
    %v225 = vsel %vm224, %v221, %v223
    %v226 = vsel %vm224, %v223, %v221
    %v227 = vld [vmem:[#allocation2 + $0x20] sm:$0xff]
    %v228 = vld [vmem:[#allocation2 + $0x28] sm:$0xff]
    %v230 = vsel %vm53, %v227, 0
    %v233 = vsel %vm53, %v228, 0
    %235 = vmatprep.subr.mxu0 0.0
    %236 = vmatpush1.msra.mxu0 0.0
    %237 = vmatprep.subr.mxu0 0.0
    %238 = vmatpush1.msra.mxu0 0.0
    %239 = vmatprep.subr.mxu0 0.0
    %240 = vmatpush1.msra.mxu0 0.0
    %241 = vmatprep.subr.mxu0 0.0
    %242 = vmatpush1.msra.mxu0 0.0
    %243 = vmatprep.subr.mxu0 0.0
    %244 = vmatpush1.msra.mxu0 0.0
    %245 = vmatprep.subr.mxu0 0.0
    %246 = vmatpush1.msra.mxu0 0.0
    %247 = vmatprep.subr.mxu0 0.0
    %248 = vmatpush1.msra.mxu0 0.0
    %249 = vmatprep.subr.mxu0 0.0
    %250 = vmatpush1.msra.mxu0 0.0
    %251 = vmatprep.subr.mxu0 0.0
    %252 = vmatpush1.msra.mxu0 0.0
    %253 = vmatprep.subr.mxu0 0.0
    %254 = vmatpush1.msra.mxu0 0.0
    %255 = vmatprep.subr.mxu0 0.0
    %256 = vmatpush1.msra.mxu0 0.0
    %257 = vmatprep.subr.mxu0 0.0
    %258 = vmatpush1.msra.mxu0 0.0
    %259 = vmatprep.subr.mxu0 0.0
    %260 = vmatpush1.msra.mxu0 0.0
    %261 = vmatprep.subr.mxu0 0.0
    %262 = vmatpush1.msra.mxu0 0.0
    %263 = vmatprep.subr.mxu0 0.0
    %264 = vmatpush1.msra.mxu0 0.0
    %265 = vmatprep.subr.mxu0 %v226
    %266 = vmatpush1.msra.mxu0 %v225
    %267 = vmatprep.subr.mxu0 0.0
    %268 = vmatpush2.msra.mxu0 0.0
    %269 = vmatprep.subr.mxu0 0.0
    %270 = vmatpush2.msra.mxu0 0.0
    %271 = vmatprep.subr.mxu0 0.0
    %272 = vmatpush2.msra.mxu0 0.0
    %273 = vmatprep.subr.mxu0 0.0
    %274 = vmatpush2.msra.mxu0 0.0
    %275 = vmatprep.subr.mxu0 0.0
    %276 = vmatpush2.msra.mxu0 0.0
    %277 = vmatprep.subr.mxu0 0.0
    %278 = vmatpush2.msra.mxu0 0.0
    %279 = vmatprep.subr.mxu0 0.0
    %280 = vmatpush2.msra.mxu0 0.0
    %281 = vmatprep.subr.mxu0 0.0
    %282 = vmatpush2.msra.mxu0 0.0
    %283 = vmatprep.subr.mxu0 0.0
    %284 = vmatpush2.msra.mxu0 0.0
    %285 = vmatprep.subr.mxu0 0.0
    %286 = vmatpush2.msra.mxu0 0.0
    %287 = vmatprep.subr.mxu0 0.0
    %288 = vmatpush2.msra.mxu0 0.0
    %289 = vmatprep.subr.mxu0 0.0
    %290 = vmatpush2.msra.mxu0 0.0
    %291 = vmatprep.subr.mxu0 0.0
    %292 = vmatpush2.msra.mxu0 0.0
    %293 = vmatprep.subr.mxu0 0.0
    %294 = vmatpush2.msra.mxu0 0.0
    %295 = vmatprep.subr.mxu0 0.0
    %296 = vmatpush2.msra.mxu0 0.0
    %297 = vmatprep.subr.mxu0 0.0
    %298 = vmatpush2.msra.mxu0 0.0
    %299 = vmatprep.mubr.f32.mxu0 0.0
    %300 = vmatmul.mubr.f32.gmra.mxu0 %v230
    %v301 = vpop.f32.mrf.mxu0
    %v302 = vadd.f32 0.0, %v301
    %v303 = vpop.f32.mrf.mxu0
    %v304 = vadd.f32 0.0, %v303
    %305 = vmatprep.mubr.f32.mxu0 0.0
    %306 = vmatmul.mubr.f32.gmra.mxu0 %v233
    %v307 = vpop.f32.mrf.mxu0
    %v308 = vadd.f32 0.0, %v307
    %v309 = vpop.f32.mrf.mxu0
    %v310 = vadd.f32 0.0, %v309
    %311 = vdwg.mxu0
    %v312 = vadd.f32 %v210, %v302
    %v313 = vadd.f32 %v212, %v304
    %v314 = vadd.f32 %v216, %v308
    %v315 = vadd.f32 %v218, %v310
    %v316 = vadd.s32 %v45, 128
    %v317 = vand.u32 %v45, 127
    %v318 = vand.u32 %v316, 127
    %vm319 = vcmp.lt.s32.totalorder %v317, 16
    %vm320 = vcmp.lt.s32.totalorder %v318, 16
    %v321 = vsel %vm319, 1, 0
    %v322 = vsel %vm320, 1, 0
    %vm323 = vcmp.eq.s32.totalorder %v321, 1
    %vm324 = vcmp.eq.s32.totalorder %v322, 1
    %v325 = vsel %vm323, %v312, 0.0
    %v326 = vsel %vm324, %v313, 0.0
    %v327 = vsel %vm323, %v314, 0.0
    %v328 = vsel %vm324, %v315, 0.0
    %v329 = vadd.f32 %v325, %v326
    %330 = vadd.xlane.f32.xlu0 %v329
    %v331 = vpop.xlane.xlu0 %330
    %v332 = vadd.f32 %v327, %v328
    %333 = vadd.xlane.f32.xlu0 %v332
    %v334 = vpop.xlane.xlu0 %333
    %v335 = vmul.f32 %v331, 0.03125
    %v336 = vmul.f32 %v334, 0.03125
    %v337 = vsub.f32 %v325, %v335
    %v338 = vsub.f32 %v326, %v335
    %v339 = vsub.f32 %v327, %v336
    %v340 = vsub.f32 %v328, %v336
    %v341 = vsel %vm323, %v337, 0.0
    %v342 = vsel %vm324, %v338, 0.0
    %v343 = vsel %vm323, %v339, 0.0
    %v344 = vsel %vm324, %v340, 0.0
    %v345 = vmul.f32 %v341, %v341
    %v346 = vmul.f32 %v342, %v342
    %v347 = vmul.f32 %v343, %v343
    %v348 = vmul.f32 %v344, %v344
    %v349 = vadd.f32 %v345, %v346
    %350 = vadd.xlane.f32.xlu0 %v349
    %v351 = vpop.xlane.xlu0 %350
    %v352 = vadd.f32 %v347, %v348
    %353 = vadd.xlane.f32.xlu0 %v352
    %v354 = vpop.xlane.xlu0 %353
    %v355 = vmul.f32 %v351, 0.03125
    %v356 = vmul.f32 %v354, 0.03125
    %v357 = vld [vmem:[#allocation2 + $0x30] sm:$0xff]
    %v358 = vld [vmem:[#allocation2 + $0x38] sm:$0xff]
    %v359 = vadd.f32 %v355, 1e-05
    %v360 = vadd.f32 %v356, 1e-05
    %v361 = vrsqrt.pop %v359
    %v362 = vrsqrt.pop %v360
    %v363 = vmul.f32 %v361, %v357
    %v364 = vmul.f32 %v362, %v358
    %366 = vset.pattern.permute.xlu0 1
    %367 = vperm.xlu0 %366, %v363
    %v368 = vpop.permute.xlu0 %367
    %371 = vset.pattern.permute.xlu0 1
    %372 = vperm.xlu0 %371, %v364
    %v373 = vpop.permute.xlu0 %372
    %v375 = vmul.f32 %v341, %v368
    %v376 = vmul.f32 %v342, %v368
    %v377 = vmul.f32 %v343, %v373
    %v378 = vmul.f32 %v344, %v373
    %380 = vset.pattern.permute.xlu0 2
    %381 = vperm.xlu0 %380, %v357
    %v382 = vpop.permute.xlu0 %381
    %385 = vset.pattern.permute.xlu0 2
    %386 = vperm.xlu0 %385, %v358
    %v387 = vpop.permute.xlu0 %386
    %v389 = vadd.f32 %v375, %v382
    %v390 = vadd.f32 %v376, %v382
    %v391 = vadd.f32 %v377, %v387
    %v392 = vadd.f32 %v378, %v387
    %vm393 = vcmp.ge.f32.partialorder %v389, 0.0
    %vm394 = vcmp.ge.f32.partialorder %v390, 0.0
    %vm395 = vcmp.ge.f32.partialorder %v391, 0.0
    %vm396 = vcmp.ge.f32.partialorder %v392, 0.0
    %v397 = vmul.f32 %v389, 0.01
    %v398 = vmul.f32 %v390, 0.01
    %v399 = vmul.f32 %v391, 0.01
    %v400 = vmul.f32 %v392, 0.01
    %v401 = vsel %vm393, %v389, %v397
    %v402 = vsel %vm394, %v390, %v398
    %v403 = vsel %vm395, %v391, %v399
    %v404 = vsel %vm396, %v392, %v400
    %v405 = vsel %vm323, %v401, 0.0
    %v406 = vsel %vm324, %v402, 0.0
    %v407 = vsel %vm323, %v403, 0.0
    %v408 = vsel %vm324, %v404, 0.0
    %409 = vrot.lane.b32.xlu0 %v405, 1
    %v410 = vpop.permute.xlu0 %409
    %411 = vrot.lane.b32.xlu0 %v407, 1
    %v412 = vpop.permute.xlu0 %411
    %413 = vrot.lane.b32.xlu0 %v406, 1
    %v414 = vpop.permute.xlu0 %413
    %415 = vrot.lane.b32.xlu0 %v408, 1
    %v416 = vpop.permute.xlu0 %415
    %v417 = vsel %vm46, %v410, %v414
    %v418 = vsel %vm46, %v412, %v416
    %v419 = vsel %vm46, %v414, %v410
    %v420 = vsel %vm46, %v416, %v412
    %v421 = vld [vmem:[#allocation2 + $0x40] sm:$0xff]
    %v422 = vld [vmem:[#allocation2 + $0x48] sm:$0xff]
    %v423 = vld [vmem:[#allocation2 + $0x50] sm:$0xff]
    %v424 = vld [vmem:[#allocation2 + $0x58] sm:$0xff]
    %v425 = vld [vmem:[#allocation2 + $0x60] sm:$0xff]
    %v426 = vld [vmem:[#allocation2 + $0x68] sm:$0xff]
    %v427 = vld [vmem:[#allocation2 + $0x70] sm:$0xff]
    %v428 = vld [vmem:[#allocation2 + $0x78] sm:$0xff]
    %vm429 = vcmask 130048
    %v431 = vsel %vm429, %v425, 0
    %v434 = vsel %vm429, %v426, 0
    %v437 = vsel %vm429, %v427, 0
    %v440 = vsel %vm429, %v428, 0
    %442 = vmatprep.subr.mxu0 0.0
    %443 = vmatpush1.msra.mxu0 0.0
    %444 = vmatprep.subr.mxu0 0.0
    %445 = vmatpush1.msra.mxu0 0.0
    %446 = vmatprep.subr.mxu0 0.0
    %447 = vmatpush1.msra.mxu0 0.0
    %448 = vmatprep.subr.mxu0 0.0
    %449 = vmatpush1.msra.mxu0 0.0
    %450 = vmatprep.subr.mxu0 0.0
    %451 = vmatpush1.msra.mxu0 0.0
    %452 = vmatprep.subr.mxu0 0.0
    %453 = vmatpush1.msra.mxu0 0.0
    %454 = vmatprep.subr.mxu0 0.0
    %455 = vmatpush1.msra.mxu0 0.0
    %456 = vmatprep.subr.mxu0 0.0
    %457 = vmatpush1.msra.mxu0 0.0
    %458 = vmatprep.subr.mxu0 0.0
    %459 = vmatpush1.msra.mxu0 0.0
    %460 = vmatprep.subr.mxu0 0.0
    %461 = vmatpush1.msra.mxu0 0.0
    %462 = vmatprep.subr.mxu0 0.0
    %463 = vmatpush1.msra.mxu0 0.0
    %464 = vmatprep.subr.mxu0 0.0
    %465 = vmatpush1.msra.mxu0 0.0
    %466 = vmatprep.subr.mxu0 0.0
    %467 = vmatpush1.msra.mxu0 0.0
    %468 = vmatprep.subr.mxu0 0.0
    %469 = vmatpush1.msra.mxu0 0.0
    %470 = vmatprep.subr.mxu0 %v408
    %471 = vmatpush1.msra.mxu0 %v407
    %472 = vmatprep.subr.mxu0 %v406
    %473 = vmatpush1.msra.mxu0 %v405
    %474 = vmatprep.subr.mxu0 0.0
    %475 = vmatpush2.msra.mxu0 0.0
    %476 = vmatprep.subr.mxu0 0.0
    %477 = vmatpush2.msra.mxu0 0.0
    %478 = vmatprep.subr.mxu0 0.0
    %479 = vmatpush2.msra.mxu0 0.0
    %480 = vmatprep.subr.mxu0 0.0
    %481 = vmatpush2.msra.mxu0 0.0
    %482 = vmatprep.subr.mxu0 0.0
    %483 = vmatpush2.msra.mxu0 0.0
    %484 = vmatprep.subr.mxu0 0.0
    %485 = vmatpush2.msra.mxu0 0.0
    %486 = vmatprep.subr.mxu0 0.0
    %487 = vmatpush2.msra.mxu0 0.0
    %488 = vmatprep.subr.mxu0 0.0
    %489 = vmatpush2.msra.mxu0 0.0
    %490 = vmatprep.subr.mxu0 0.0
    %491 = vmatpush2.msra.mxu0 0.0
    %492 = vmatprep.subr.mxu0 0.0
    %493 = vmatpush2.msra.mxu0 0.0
    %494 = vmatprep.subr.mxu0 0.0
    %495 = vmatpush2.msra.mxu0 0.0
    %496 = vmatprep.subr.mxu0 0.0
    %497 = vmatpush2.msra.mxu0 0.0
    %498 = vmatprep.subr.mxu0 0.0
    %499 = vmatpush2.msra.mxu0 0.0
    %500 = vmatprep.subr.mxu0 0.0
    %501 = vmatpush2.msra.mxu0 0.0
    %502 = vmatprep.subr.mxu0 0.0
    %503 = vmatpush2.msra.mxu0 0.0
    %504 = vmatprep.subr.mxu0 0.0
    %505 = vmatpush2.msra.mxu0 0.0
    %506 = vmatprep.mubr.f32.mxu0 0.0
    %507 = vmatmul.mubr.f32.gmra.mxu0 %v431
    %v508 = vpop.f32.mrf.mxu0
    %v509 = vadd.f32 0.0, %v508
    %v510 = vpop.f32.mrf.mxu0
    %v511 = vadd.f32 0.0, %v510
    %512 = vmatprep.mubr.f32.mxu0 0.0
    %513 = vmatmul.mubr.f32.gmra.mxu0 %v434
    %v514 = vpop.f32.mrf.mxu0
    %v515 = vadd.f32 0.0, %v514
    %v516 = vpop.f32.mrf.mxu0
    %v517 = vadd.f32 0.0, %v516
    %518 = vmatprep.mubr.f32.mxu0 0.0
    %519 = vmatmul.mubr.f32.gmra.mxu0 %v437
    %v520 = vpop.f32.mrf.mxu0
    %v521 = vadd.f32 0.0, %v520
    %v522 = vpop.f32.mrf.mxu0
    %v523 = vadd.f32 0.0, %v522
    %524 = vmatprep.mubr.f32.mxu0 0.0
    %525 = vmatmul.mubr.f32.gmra.mxu0 %v440
    %v526 = vpop.f32.mrf.mxu0
    %v527 = vadd.f32 0.0, %v526
    %v528 = vpop.f32.mrf.mxu0
    %v529 = vadd.f32 0.0, %v528
    %530 = vdwg.mxu0
    %v532 = vsel %vm429, %v421, 0
    %v535 = vsel %vm429, %v422, 0
    %v538 = vsel %vm429, %v423, 0
    %v541 = vsel %vm429, %v424, 0
    %543 = vmatprep.subr.mxu0 0.0
    %544 = vmatpush1.msra.mxu0 0.0
    %545 = vmatprep.subr.mxu0 0.0
    %546 = vmatpush1.msra.mxu0 0.0
    %547 = vmatprep.subr.mxu0 0.0
    %548 = vmatpush1.msra.mxu0 0.0
    %549 = vmatprep.subr.mxu0 0.0
    %550 = vmatpush1.msra.mxu0 0.0
    %551 = vmatprep.subr.mxu0 0.0
    %552 = vmatpush1.msra.mxu0 0.0
    %553 = vmatprep.subr.mxu0 0.0
    %554 = vmatpush1.msra.mxu0 0.0
    %555 = vmatprep.subr.mxu0 0.0
    %556 = vmatpush1.msra.mxu0 0.0
    %557 = vmatprep.subr.mxu0 0.0
    %558 = vmatpush1.msra.mxu0 0.0
    %559 = vmatprep.subr.mxu0 0.0
    %560 = vmatpush1.msra.mxu0 0.0
    %561 = vmatprep.subr.mxu0 0.0
    %562 = vmatpush1.msra.mxu0 0.0
    %563 = vmatprep.subr.mxu0 0.0
    %564 = vmatpush1.msra.mxu0 0.0
    %565 = vmatprep.subr.mxu0 0.0
    %566 = vmatpush1.msra.mxu0 0.0
    %567 = vmatprep.subr.mxu0 0.0
    %568 = vmatpush1.msra.mxu0 0.0
    %569 = vmatprep.subr.mxu0 0.0
    %570 = vmatpush1.msra.mxu0 0.0
    %571 = vmatprep.subr.mxu0 %v418
    %572 = vmatpush1.msra.mxu0 %v420
    %573 = vmatprep.subr.mxu0 %v417
    %574 = vmatpush1.msra.mxu0 %v419
    %575 = vmatprep.subr.mxu0 0.0
    %576 = vmatpush2.msra.mxu0 0.0
    %577 = vmatprep.subr.mxu0 0.0
    %578 = vmatpush2.msra.mxu0 0.0
    %579 = vmatprep.subr.mxu0 0.0
    %580 = vmatpush2.msra.mxu0 0.0
    %581 = vmatprep.subr.mxu0 0.0
    %582 = vmatpush2.msra.mxu0 0.0
    %583 = vmatprep.subr.mxu0 0.0
    %584 = vmatpush2.msra.mxu0 0.0
    %585 = vmatprep.subr.mxu0 0.0
    %586 = vmatpush2.msra.mxu0 0.0
    %587 = vmatprep.subr.mxu0 0.0
    %588 = vmatpush2.msra.mxu0 0.0
    %589 = vmatprep.subr.mxu0 0.0
    %590 = vmatpush2.msra.mxu0 0.0
    %591 = vmatprep.subr.mxu0 0.0
    %592 = vmatpush2.msra.mxu0 0.0
    %593 = vmatprep.subr.mxu0 0.0
    %594 = vmatpush2.msra.mxu0 0.0
    %595 = vmatprep.subr.mxu0 0.0
    %596 = vmatpush2.msra.mxu0 0.0
    %597 = vmatprep.subr.mxu0 0.0
    %598 = vmatpush2.msra.mxu0 0.0
    %599 = vmatprep.subr.mxu0 0.0
    %600 = vmatpush2.msra.mxu0 0.0
    %601 = vmatprep.subr.mxu0 0.0
    %602 = vmatpush2.msra.mxu0 0.0
    %603 = vmatprep.subr.mxu0 0.0
    %604 = vmatpush2.msra.mxu0 0.0
    %605 = vmatprep.subr.mxu0 0.0
    %606 = vmatpush2.msra.mxu0 0.0
    %607 = vmatprep.mubr.f32.mxu0 0.0
    %608 = vmatmul.mubr.f32.gmra.mxu0 %v532
    %v609 = vpop.f32.mrf.mxu0
    %v610 = vadd.f32 %v509, %v609
    %v611 = vpop.f32.mrf.mxu0
    %v612 = vadd.f32 %v511, %v611
    %613 = vmatprep.mubr.f32.mxu0 0.0
    %614 = vmatmul.mubr.f32.gmra.mxu0 %v535
    %v615 = vpop.f32.mrf.mxu0
    %v616 = vadd.f32 %v515, %v615
    %v617 = vpop.f32.mrf.mxu0
    %v618 = vadd.f32 %v517, %v617
    %619 = vmatprep.mubr.f32.mxu0 0.0
    %620 = vmatmul.mubr.f32.gmra.mxu0 %v538
    %v621 = vpop.f32.mrf.mxu0
    %v622 = vadd.f32 %v521, %v621
    %v623 = vpop.f32.mrf.mxu0
    %v624 = vadd.f32 %v523, %v623
    %625 = vmatprep.mubr.f32.mxu0 0.0
    %626 = vmatmul.mubr.f32.gmra.mxu0 %v541
    %v627 = vpop.f32.mrf.mxu0
    %v628 = vadd.f32 %v527, %v627
    %v629 = vpop.f32.mrf.mxu0
    %v630 = vadd.f32 %v529, %v629
    %631 = vdwg.mxu0
    %632 = vrot.lane.b32.xlu0 %v405, 127
    %v633 = vpop.permute.xlu0 %632
    %634 = vrot.lane.b32.xlu0 %v407, 127
    %v635 = vpop.permute.xlu0 %634
    %636 = vrot.lane.b32.xlu0 %v406, 127
    %v637 = vpop.permute.xlu0 %636
    %638 = vrot.lane.b32.xlu0 %v408, 127
    %v639 = vpop.permute.xlu0 %638
    %v640 = vsel %vm224, %v633, %v637
    %v641 = vsel %vm224, %v635, %v639
    %v642 = vsel %vm224, %v637, %v633
    %v643 = vsel %vm224, %v639, %v635
    %v644 = vld [vmem:[#allocation2 + $0x80] sm:$0xff]
    %v645 = vld [vmem:[#allocation2 + $0x88] sm:$0xff]
    %v646 = vld [vmem:[#allocation2 + $0x90] sm:$0xff]
    %v647 = vld [vmem:[#allocation2 + $0x98] sm:$0xff]
    %v649 = vsel %vm429, %v644, 0
    %v652 = vsel %vm429, %v645, 0
    %v655 = vsel %vm429, %v646, 0
    %v658 = vsel %vm429, %v647, 0
    %660 = vmatprep.subr.mxu0 0.0
    %661 = vmatpush1.msra.mxu0 0.0
    %662 = vmatprep.subr.mxu0 0.0
    %663 = vmatpush1.msra.mxu0 0.0
    %664 = vmatprep.subr.mxu0 0.0
    %665 = vmatpush1.msra.mxu0 0.0
    %666 = vmatprep.subr.mxu0 0.0
    %667 = vmatpush1.msra.mxu0 0.0
    %668 = vmatprep.subr.mxu0 0.0
    %669 = vmatpush1.msra.mxu0 0.0
    %670 = vmatprep.subr.mxu0 0.0
    %671 = vmatpush1.msra.mxu0 0.0
    %672 = vmatprep.subr.mxu0 0.0
    %673 = vmatpush1.msra.mxu0 0.0
    %674 = vmatprep.subr.mxu0 0.0
    %675 = vmatpush1.msra.mxu0 0.0
    %676 = vmatprep.subr.mxu0 0.0
    %677 = vmatpush1.msra.mxu0 0.0
    %678 = vmatprep.subr.mxu0 0.0
    %679 = vmatpush1.msra.mxu0 0.0
    %680 = vmatprep.subr.mxu0 0.0
    %681 = vmatpush1.msra.mxu0 0.0
    %682 = vmatprep.subr.mxu0 0.0
    %683 = vmatpush1.msra.mxu0 0.0
    %684 = vmatprep.subr.mxu0 0.0
    %685 = vmatpush1.msra.mxu0 0.0
    %686 = vmatprep.subr.mxu0 0.0
    %687 = vmatpush1.msra.mxu0 0.0
    %688 = vmatprep.subr.mxu0 %v643
    %689 = vmatpush1.msra.mxu0 %v641
    %690 = vmatprep.subr.mxu0 %v642
    %691 = vmatpush1.msra.mxu0 %v640
    %692 = vmatprep.subr.mxu0 0.0
    %693 = vmatpush2.msra.mxu0 0.0
    %694 = vmatprep.subr.mxu0 0.0
    %695 = vmatpush2.msra.mxu0 0.0
    %696 = vmatprep.subr.mxu0 0.0
    %697 = vmatpush2.msra.mxu0 0.0
    %698 = vmatprep.subr.mxu0 0.0
    %699 = vmatpush2.msra.mxu0 0.0
    %700 = vmatprep.subr.mxu0 0.0
    %701 = vmatpush2.msra.mxu0 0.0
    %702 = vmatprep.subr.mxu0 0.0
    %703 = vmatpush2.msra.mxu0 0.0
    %704 = vmatprep.subr.mxu0 0.0
    %705 = vmatpush2.msra.mxu0 0.0
    %706 = vmatprep.subr.mxu0 0.0
    %707 = vmatpush2.msra.mxu0 0.0
    %708 = vmatprep.subr.mxu0 0.0
    %709 = vmatpush2.msra.mxu0 0.0
    %710 = vmatprep.subr.mxu0 0.0
    %711 = vmatpush2.msra.mxu0 0.0
    %712 = vmatprep.subr.mxu0 0.0
    %713 = vmatpush2.msra.mxu0 0.0
    %714 = vmatprep.subr.mxu0 0.0
    %715 = vmatpush2.msra.mxu0 0.0
    %716 = vmatprep.subr.mxu0 0.0
    %717 = vmatpush2.msra.mxu0 0.0
    %718 = vmatprep.subr.mxu0 0.0
    %719 = vmatpush2.msra.mxu0 0.0
    %720 = vmatprep.subr.mxu0 0.0
    %721 = vmatpush2.msra.mxu0 0.0
    %722 = vmatprep.subr.mxu0 0.0
    %723 = vmatpush2.msra.mxu0 0.0
    %724 = vmatprep.mubr.f32.mxu0 0.0
    %725 = vmatmul.mubr.f32.gmra.mxu0 %v649
    %v726 = vpop.f32.mrf.mxu0
    %v727 = vadd.f32 0.0, %v726
    %v728 = vpop.f32.mrf.mxu0
    %v729 = vadd.f32 0.0, %v728
    %730 = vmatprep.mubr.f32.mxu0 0.0
    %731 = vmatmul.mubr.f32.gmra.mxu0 %v652
    %v732 = vpop.f32.mrf.mxu0
    %v733 = vadd.f32 0.0, %v732
    %v734 = vpop.f32.mrf.mxu0
    %v735 = vadd.f32 0.0, %v734
    %736 = vmatprep.mubr.f32.mxu0 0.0
    %737 = vmatmul.mubr.f32.gmra.mxu0 %v655
    %v738 = vpop.f32.mrf.mxu0
    %v739 = vadd.f32 0.0, %v738
    %v740 = vpop.f32.mrf.mxu0
    %v741 = vadd.f32 0.0, %v740
    %742 = vmatprep.mubr.f32.mxu0 0.0
    %743 = vmatmul.mubr.f32.gmra.mxu0 %v658
    %v744 = vpop.f32.mrf.mxu0
    %v745 = vadd.f32 0.0, %v744
    %v746 = vpop.f32.mrf.mxu0
    %v747 = vadd.f32 0.0, %v746
    %748 = vdwg.mxu0
    %v749 = vadd.f32 %v610, %v727
    %v750 = vadd.f32 %v612, %v729
    %v751 = vadd.f32 %v616, %v733
    %v752 = vadd.f32 %v618, %v735
    %v753 = vadd.f32 %v622, %v739
    %v754 = vadd.f32 %v624, %v741
    %v755 = vadd.f32 %v628, %v745
    %v756 = vadd.f32 %v630, %v747
    %v757 = vsel %vm323, %v749, 0.0
    %v758 = vsel %vm324, %v750, 0.0
    %v759 = vsel %vm323, %v751, 0.0
    %v760 = vsel %vm324, %v752, 0.0
    %v761 = vsel %vm323, %v753, 0.0
    %v762 = vsel %vm324, %v754, 0.0
    %v763 = vsel %vm323, %v755, 0.0
    %v764 = vsel %vm324, %v756, 0.0
    %v765 = vadd.f32 %v757, %v758
    %766 = vadd.xlane.f32.xlu0 %v765
    %v767 = vpop.xlane.xlu0 %766
    %v768 = vadd.f32 %v759, %v760
    %769 = vadd.xlane.f32.xlu0 %v768
    %v770 = vpop.xlane.xlu0 %769
    %v771 = vadd.f32 %v761, %v762
    %772 = vadd.xlane.f32.xlu0 %v771
    %v773 = vpop.xlane.xlu0 %772
    %v774 = vadd.f32 %v763, %v764
    %775 = vadd.xlane.f32.xlu0 %v774
    %v776 = vpop.xlane.xlu0 %775
    %v777 = vmul.f32 %v767, 0.03125
    %v778 = vmul.f32 %v770, 0.03125
    %v779 = vmul.f32 %v773, 0.03125
    %v780 = vmul.f32 %v776, 0.03125
    %v781 = vsub.f32 %v757, %v777
    %v782 = vsub.f32 %v758, %v777
    %v783 = vsub.f32 %v759, %v778
    %v784 = vsub.f32 %v760, %v778
    %v785 = vsub.f32 %v761, %v779
    %v786 = vsub.f32 %v762, %v779
    %v787 = vsub.f32 %v763, %v780
    %v788 = vsub.f32 %v764, %v780
    %v789 = vsel %vm323, %v781, 0.0
    %v790 = vsel %vm324, %v782, 0.0
    %v791 = vsel %vm323, %v783, 0.0
    %v792 = vsel %vm324, %v784, 0.0
    %v793 = vsel %vm323, %v785, 0.0
    %v794 = vsel %vm324, %v786, 0.0
    %v795 = vsel %vm323, %v787, 0.0
    %v796 = vsel %vm324, %v788, 0.0
    %v797 = vmul.f32 %v789, %v789
    %v798 = vmul.f32 %v790, %v790
    %v799 = vmul.f32 %v791, %v791
    %v800 = vmul.f32 %v792, %v792
    %v801 = vmul.f32 %v793, %v793
    %v802 = vmul.f32 %v794, %v794
    %v803 = vmul.f32 %v795, %v795
    %v804 = vmul.f32 %v796, %v796
    %v805 = vadd.f32 %v797, %v798
    %806 = vadd.xlane.f32.xlu0 %v805
    %v807 = vpop.xlane.xlu0 %806
    %v808 = vadd.f32 %v799, %v800
    %809 = vadd.xlane.f32.xlu0 %v808
    %v810 = vpop.xlane.xlu0 %809
    %v811 = vadd.f32 %v801, %v802
    %812 = vadd.xlane.f32.xlu0 %v811
    %v813 = vpop.xlane.xlu0 %812
    %v814 = vadd.f32 %v803, %v804
    %815 = vadd.xlane.f32.xlu0 %v814
    %v816 = vpop.xlane.xlu0 %815
    %v817 = vmul.f32 %v807, 0.03125
    %v818 = vmul.f32 %v810, 0.03125
    %v819 = vmul.f32 %v813, 0.03125
    %v820 = vmul.f32 %v816, 0.03125
    %v821 = vld [vmem:[#allocation2 + $0xa0] sm:$0xff]
    %v822 = vld [vmem:[#allocation2 + $0xa8] sm:$0xff]
    %v823 = vld [vmem:[#allocation2 + $0xb0] sm:$0xff]
    %v824 = vld [vmem:[#allocation2 + $0xb8] sm:$0xff]
    %v825 = vadd.f32 %v817, 1e-05
    %v826 = vadd.f32 %v818, 1e-05
    %v827 = vadd.f32 %v819, 1e-05
    %v828 = vadd.f32 %v820, 1e-05
    %v829 = vrsqrt.pop %v825
    %v830 = vrsqrt.pop %v826
    %v831 = vrsqrt.pop %v827
    %v832 = vrsqrt.pop %v828
    %v833 = vmul.f32 %v829, %v821
    %v834 = vmul.f32 %v830, %v822
    %v835 = vmul.f32 %v831, %v823
    %v836 = vmul.f32 %v832, %v824
    %838 = vset.pattern.permute.xlu0 1
    %839 = vperm.xlu0 %838, %v833
    %v840 = vpop.permute.xlu0 %839
    %843 = vset.pattern.permute.xlu0 1
    %844 = vperm.xlu0 %843, %v834
    %v845 = vpop.permute.xlu0 %844
    %848 = vset.pattern.permute.xlu0 1
    %849 = vperm.xlu0 %848, %v835
    %v850 = vpop.permute.xlu0 %849
    %853 = vset.pattern.permute.xlu0 1
    %854 = vperm.xlu0 %853, %v836
    %v855 = vpop.permute.xlu0 %854
    %v857 = vmul.f32 %v789, %v840
    %v858 = vmul.f32 %v790, %v840
    %v859 = vmul.f32 %v791, %v845
    %v860 = vmul.f32 %v792, %v845
    %v861 = vmul.f32 %v793, %v850
    %v862 = vmul.f32 %v794, %v850
    %v863 = vmul.f32 %v795, %v855
    %v864 = vmul.f32 %v796, %v855
    %866 = vset.pattern.permute.xlu0 2
    %867 = vperm.xlu0 %866, %v821
    %v868 = vpop.permute.xlu0 %867
    %871 = vset.pattern.permute.xlu0 2
    %872 = vperm.xlu0 %871, %v822
    %v873 = vpop.permute.xlu0 %872
    %876 = vset.pattern.permute.xlu0 2
    %877 = vperm.xlu0 %876, %v823
    %v878 = vpop.permute.xlu0 %877
    %881 = vset.pattern.permute.xlu0 2
    %882 = vperm.xlu0 %881, %v824
    %v883 = vpop.permute.xlu0 %882
    %v885 = vadd.f32 %v857, %v868
    %v886 = vadd.f32 %v858, %v868
    %v887 = vadd.f32 %v859, %v873
    %v888 = vadd.f32 %v860, %v873
    %v889 = vadd.f32 %v861, %v878
    %v890 = vadd.f32 %v862, %v878
    %v891 = vadd.f32 %v863, %v883
    %v892 = vadd.f32 %v864, %v883
    %vm893 = vcmp.ge.f32.partialorder %v885, 0.0
    %vm894 = vcmp.ge.f32.partialorder %v886, 0.0
    %vm895 = vcmp.ge.f32.partialorder %v887, 0.0
    %vm896 = vcmp.ge.f32.partialorder %v888, 0.0
    %vm897 = vcmp.ge.f32.partialorder %v889, 0.0
    %vm898 = vcmp.ge.f32.partialorder %v890, 0.0
    %vm899 = vcmp.ge.f32.partialorder %v891, 0.0
    %vm900 = vcmp.ge.f32.partialorder %v892, 0.0
    %v901 = vmul.f32 %v885, 0.01
    %v902 = vmul.f32 %v886, 0.01
    %v903 = vmul.f32 %v887, 0.01
    %v904 = vmul.f32 %v888, 0.01
    %v905 = vmul.f32 %v889, 0.01
    %v906 = vmul.f32 %v890, 0.01
    %v907 = vmul.f32 %v891, 0.01
    %v908 = vmul.f32 %v892, 0.01
    %v909 = vsel %vm893, %v885, %v901
    %v910 = vsel %vm894, %v886, %v902
    %v911 = vsel %vm895, %v887, %v903
    %v912 = vsel %vm896, %v888, %v904
    %v913 = vsel %vm897, %v889, %v905
    %v914 = vsel %vm898, %v890, %v906
    %v915 = vsel %vm899, %v891, %v907
    %v916 = vsel %vm900, %v892, %v908
    %v917 = vsel %vm323, %v909, 0.0
    %v918 = vsel %vm324, %v910, 0.0
    %v919 = vsel %vm323, %v911, 0.0
    %v920 = vsel %vm324, %v912, 0.0
    %v921 = vsel %vm323, %v913, 0.0
    %v922 = vsel %vm324, %v914, 0.0
    %v923 = vsel %vm323, %v915, 0.0
    %v924 = vsel %vm324, %v916, 0.0
    %925 = vst [vmem:[#allocation7] sm:$0xff] %v917
    %926 = vst [vmem:[#allocation7 + $0x8] sm:$0xff] %v918
    %927 = vst [vmem:[#allocation7 + $0x10] sm:$0xff] %v919
    %928 = vst [vmem:[#allocation7 + $0x18] sm:$0xff] %v920
    %929 = vst [vmem:[#allocation7 + $0x20] sm:$0xff] %v921
    %930 = vst [vmem:[#allocation7 + $0x28] sm:$0xff] %v922
    %931 = vst [vmem:[#allocation7 + $0x30] sm:$0xff] %v923
    %932 = vst [vmem:[#allocation7 + $0x38] sm:$0xff] %v924
    // Predicated region
    $region18: #{tpu_custom_call.1} parent=1 // pred_check
      _
    $region19: #{tpu_custom_call.1} parent=1 // pred_check_branch
      %934 = sbr.rel (0) target = $region21
    $region20: #{tpu_custom_call.1} parent=1 // pred_region
      %s936 = ssub.s32 1024, 1024
      %937 = vsyncadd [#allocation4], %s936
      %s938 = sshll.u32 [#allocation7], 4
      %s939 = int_to_ptr.vmem [resolvable:$true] %s938
      %944 = dma.vmem_to_hbm [thread:$0]  %s939, 1024, %s2, [#allocation4], 256, 256, 16
    $region21: #{tpu_custom_call.1} parent=1 // pred_fallthru
      _
    // Predicated region
    $region22: #{tpu_custom_call.1} parent=1 // pred_check
      _
    $region23: #{tpu_custom_call.1} parent=1 // pred_check_branch
      %946 = sbr.rel (0) target = $region25
    $region24: #{tpu_custom_call.1} parent=1 // pred_region
      %947 = dma.done [#allocation4], 1024
    $region25: #{tpu_custom_call.1} parent=1 // pred_fallthru
      _
    %948 = vsyncpa [#allocation3], 1
    %949 = vsyncpa [#allocation6], 1
    %950 = vsyncpa [#allocation4], 1

</llo_original>
